<compile_context>
chip_gen: v7x
topology: tpu7x:2x2x1
jax: 0.10.0
libtpu: 0.0.40
codegen_flags: <defaults>
</compile_context>

<pallas_src>
import jax
import jax.numpy as jnp
from jax.experimental import pallas as pl
from jax.experimental.pallas import tpu as pltpu


# ----------------------------- kernels --------------------------------------


def gcn_fused_kernel(a_ref, x_ref, w1_ref, b1_ref, w2_ref, b2_ref,
                     w3_ref, b3_ref, o_ref):
    """Whole graph in VMEM: softmax(relu(A@(relu(A@(X@W1)+b1)@W2)+b2)@W3+b3)."""
    xw = jnp.dot(x_ref[...], w1_ref[...], preferred_element_type=jnp.float32)
    h1 = jnp.dot(a_ref[...], xw.astype(jnp.bfloat16),
                 preferred_element_type=jnp.float32)
    h1 = jnp.maximum(h1 + b1_ref[...], 0.0).astype(jnp.bfloat16)

    hw = jnp.dot(h1, w2_ref[...], preferred_element_type=jnp.float32)
    h2 = jnp.dot(a_ref[...], hw.astype(jnp.bfloat16),
                 preferred_element_type=jnp.float32)
    h2 = jnp.maximum(h2 + b2_ref[...], 0.0)

    logits = jnp.dot(h2.astype(jnp.bfloat16), w3_ref[...],
                     preferred_element_type=jnp.float32) + b3_ref[...]
    m = jnp.max(logits, axis=-1, keepdims=True)
    e = jnp.exp(logits - m)
    s = jnp.sum(e, axis=-1, keepdims=True)
    o_ref[...] = e * pl.reciprocal(s, approx=True)


def proj_kernel(x_ref, w_ref, o_ref):
    """Row tile of the dense projection  Y = X @ W  (computed once, not per A tile)."""
    o_ref[...] = jnp.dot(x_ref[...], w_ref[...],
                         preferred_element_type=jnp.float32).astype(o_ref.dtype)


def agg_relu_kernel(a_ref, y_ref, b_ref, o_ref, acc_ref):
    """(row, K)-tiled  relu(A_hat @ Y + b)  with f32 accumulator (P3)."""
    @pl.when(pl.program_id(1) == 0)
    def _():
        acc_ref[...] = jnp.zeros_like(acc_ref)

    acc_ref[...] += jnp.dot(a_ref[...], y_ref[...],
                            preferred_element_type=jnp.float32)

    @pl.when(pl.program_id(1) == pl.num_programs(1) - 1)
    def _():
        o_ref[...] = jnp.maximum(acc_ref[...] + b_ref[...], 0.0).astype(o_ref.dtype)


def agg_head_kernel(a_ref, y_ref, b2_ref, w3_ref, b3_ref, o_ref, acc_ref):
    """(row, K)-tiled  softmax( relu(A_hat @ Y + b2) @ W3 + b3 )  with f32 accumulator."""
    @pl.when(pl.program_id(1) == 0)
    def _():
        acc_ref[...] = jnp.zeros_like(acc_ref)

    acc_ref[...] += jnp.dot(a_ref[...], y_ref[...],
                            preferred_element_type=jnp.float32)

    @pl.when(pl.program_id(1) == pl.num_programs(1) - 1)
    def _():
        h2 = jnp.maximum(acc_ref[...] + b2_ref[...], 0.0)
        logits = jnp.dot(h2.astype(jnp.bfloat16), w3_ref[...],
                         preferred_element_type=jnp.float32) + b3_ref[...]
        m = jnp.max(logits, axis=-1, keepdims=True)
        e = jnp.exp(logits - m)
        s = jnp.sum(e, axis=-1, keepdims=True)
        o_ref[...] = e * pl.reciprocal(s, approx=True)


# ----------------------------- sizing helpers ---------------------------------


def _round_up(v, m):
    return ((v + m - 1) // m) * m


def _pad2d(a, rows, cols, fill=0.0):
    r, c = a.shape
    return jnp.pad(a, ((0, rows - r), (0, cols - c)), constant_values=fill)


def _vmem_cap_bytes():
    """Physical VMEM of this generation (v5e/v6e: 128 MiB, v7x: 64 MiB)."""
    try:
        return int(pltpu.get_tpu_info().vmem_capacity_bytes)
    except Exception:
        return 64 * 2 ** 20  # conservative (v7x per-core)


def _vmem_limit(needed_bytes, cap):
    # Scoped-VMEM request: enough for the kernel, capped at ~85% of physical so Mosaic
    # internal scratch still has headroom (important on v7x's 64 MiB).
    return int(min(int(cap * 0.85), max(16 * 2 ** 20, 2 * needed_bytes)))


def _fused_vmem_bytes(n_pad, f_pad, h_pad, c_pad):
    """Fused-kernel footprint: 2x-buffered inputs + f32 output + on-chip intermediates."""
    weights = f_pad * h_pad + h_pad * h_pad + h_pad * c_pad
    inputs = 2 * 2 * (n_pad * n_pad + n_pad * f_pad + weights) \
        + 2 * 4 * (2 * h_pad + c_pad)
    out = 2 * 4 * n_pad * c_pad
    interm = n_pad * h_pad * (4 + 2 + 4 + 4) + 2 * n_pad * c_pad * 4
    return inputs + out + interm


def _agg_footprint(tm, tk, h_pad, c_pad):
    a_blk = 2 * tm * tk * 2                                   # bf16 A block, 2-deep buffers
    y_blk = 2 * tk * h_pad * 2                                # bf16 XW / HW block
    w_blk = 2 * (h_pad * c_pad * 2 + (h_pad + c_pad) * 4)     # head weights + biases
    out_blk = 2 * tm * max(h_pad * 2, c_pad * 4)
    scratch = tm * h_pad * 4 + 2 * tm * c_pad * 4             # f32 acc + epilogue temps
    return a_blk + y_blk + w_blk + out_blk + scratch


def _proj_footprint(tm, in_dim, h_pad):
    return 2 * (tm * in_dim * 2 + in_dim * h_pad * 2 + tm * h_pad * 2) + tm * h_pad * 4


def _pick_agg_tiles(n_pad, h_pad, c_pad, budget):
    """Row tile (>=2 tiles so v7x megacore can shard) and contraction tile (128-aligned)."""
    tm_max = max(n_pad // 2, 64)
    tm = 64
    for t in (512, 384, 256, 128):
        if t <= tm_max and n_pad % t == 0 and _agg_footprint(t, 128, h_pad, c_pad) <= budget:
            tm = t
            break
    tk = 128
    for t in (512, 384, 256):
        if n_pad % t == 0 and _agg_footprint(tm, t, h_pad, c_pad) <= budget:
            tk = t
            break
    return tm, tk


# ----------------------------- forward paths ----------------------------------


def _gcn_fused(a_bf, x_bf, w1_bf, b1_p, w2_bf, b2_p, w3_bf, b3_p,
               n_pad, f_pad, h_pad, c_pad, cap):
    full = lambda r, cc: pl.BlockSpec((r, cc), lambda i: (0, 0))
    needed = _fused_vmem_bytes(n_pad, f_pad, h_pad, c_pad)
    cost = pl.CostEstimate(
        flops=int(2 * n_pad * f_pad * h_pad + 4 * n_pad * n_pad * h_pad
                  + 2 * n_pad * h_pad * h_pad + 2 * n_pad * h_pad * c_pad),
        transcendentals=int(n_pad * c_pad + n_pad),
        bytes_accessed=int(2 * (n_pad * n_pad + n_pad * f_pad + f_pad * h_pad
                                + h_pad * h_pad + h_pad * c_pad)
                           + 4 * (2 * h_pad + c_pad) + 4 * n_pad * c_pad),
    )
    return pl.pallas_call(
        gcn_fused_kernel,
        out_shape=jax.ShapeDtypeStruct((n_pad, c_pad), jnp.float32),
        grid_spec=pltpu.PrefetchScalarGridSpec(
            num_scalar_prefetch=0,
            grid=(1,),
            in_specs=[full(n_pad, n_pad), full(n_pad, f_pad),
                      full(f_pad, h_pad), full(1, h_pad),
                      full(h_pad, h_pad), full(1, h_pad),
                      full(h_pad, c_pad), full(1, c_pad)],
            out_specs=full(n_pad, c_pad),
        ),
        compiler_params=pltpu.CompilerParams(
            dimension_semantics=("arbitrary",),
            vmem_limit_bytes=_vmem_limit(needed, cap)),
        cost_estimate=cost,
    )(a_bf, x_bf, w1_bf, b1_p, w2_bf, b2_p, w3_bf, b3_p)


def _gcn_tiled(a_bf, x_bf, w1_bf, b1_p, w2_bf, b2_p, w3_bf, b3_p,
               n_pad, f_pad, h_pad, c_pad, cap):
    budget = int(0.40 * cap)
    tm, tk = _pick_agg_tiles(n_pad, h_pad, c_pad, budget)
    grid_m = n_pad // tm
    grid_k = n_pad // tk

    def proj(x_in, w_in, in_dim):
        return pl.pallas_call(
            proj_kernel,
            out_shape=jax.ShapeDtypeStruct((n_pad, h_pad), jnp.bfloat16),
            grid_spec=pltpu.PrefetchScalarGridSpec(
                num_scalar_prefetch=0,
                grid=(grid_m,),
                in_specs=[pl.BlockSpec((tm, in_dim), lambda i: (i, 0)),
                          pl.BlockSpec((in_dim, h_pad), lambda i: (0, 0))],
                out_specs=pl.BlockSpec((tm, h_pad), lambda i: (i, 0)),
            ),
            compiler_params=pltpu.CompilerParams(
                dimension_semantics=("parallel",),
                vmem_limit_bytes=_vmem_limit(_proj_footprint(tm, in_dim, h_pad), cap)),
        )(x_in, w_in)

    a_spec = pl.BlockSpec((tm, tk), lambda i, k: (i, k))
    y_spec = pl.BlockSpec((tk, h_pad), lambda i, k: (k, 0))
    bh_spec = pl.BlockSpec((1, h_pad), lambda i, k: (0, 0))
    agg_limit = _vmem_limit(_agg_footprint(tm, tk, h_pad, c_pad), cap)

    # ---- conv1: H1 = relu(A_hat @ (X @ W1) + b1) ----------------------------
    xw = proj(x_bf, w1_bf, f_pad)
    cost1 = pl.CostEstimate(
        flops=int(2 * n_pad * n_pad * h_pad), transcendentals=0,
        bytes_accessed=int(2 * n_pad * n_pad + grid_m * 2 * n_pad * h_pad
                           + 4 * h_pad + 2 * n_pad * h_pad))
    h1 = pl.pallas_call(
        agg_relu_kernel,
        out_shape=jax.ShapeDtypeStruct((n_pad, h_pad), jnp.bfloat16),
        grid_spec=pltpu.PrefetchScalarGridSpec(
            num_scalar_prefetch=0,
            grid=(grid_m, grid_k),
            in_specs=[a_spec, y_spec, bh_spec],
            out_specs=pl.BlockSpec((tm, h_pad), lambda i, k: (i, 0)),
            scratch_shapes=[pltpu.VMEM((tm, h_pad), jnp.float32)],
        ),
        compiler_params=pltpu.CompilerParams(
            dimension_semantics=("parallel", "arbitrary"),
            vmem_limit_bytes=agg_limit),
        cost_estimate=cost1,
    )(a_bf, xw, b1_p)

    # ---- conv2 + linear + softmax -------------------------------------------
    hw = proj(h1, w2_bf, h_pad)
    cost2 = pl.CostEstimate(
        flops=int(2 * n_pad * n_pad * h_pad + 2 * n_pad * h_pad * c_pad),
        transcendentals=int(n_pad * c_pad + n_pad),
        bytes_accessed=int(2 * n_pad * n_pad
                           + grid_m * (2 * n_pad * h_pad + 2 * h_pad * c_pad
                                       + 4 * (h_pad + c_pad))
                           + 4 * n_pad * c_pad))
    out = pl.pallas_call(
        agg_head_kernel,
        out_shape=jax.ShapeDtypeStruct((n_pad, c_pad), jnp.float32),
        grid_spec=pltpu.PrefetchScalarGridSpec(
            num_scalar_prefetch=0,
            grid=(grid_m, grid_k),
            in_specs=[a_spec, y_spec, bh_spec,
                      pl.BlockSpec((h_pad, c_pad), lambda i, k: (0, 0)),
                      pl.BlockSpec((1, c_pad), lambda i, k: (0, 0))],
            out_specs=pl.BlockSpec((tm, c_pad), lambda i, k: (i, 0)),
            scratch_shapes=[pltpu.VMEM((tm, h_pad), jnp.float32)],
        ),
        compiler_params=pltpu.CompilerParams(
            dimension_semantics=("parallel", "arbitrary"),
            vmem_limit_bytes=agg_limit),
        cost_estimate=cost2,
    )(a_bf, hw, b2_p, w3_bf, b3_p)
    return out


def gcn_forward(a_hat, x, params, *, force_tiled=False):
    """conv1 -> relu -> conv2 -> relu -> linear -> softmax."""
    w1, b1, w2, b2, w3, b3 = params
    n, f = x.shape
    h = w1.shape[1]
    c = w3.shape[1]

    # Node dim padded to 128 (lane dim of A blocks AND MXU K dim of A@(XW));
    # feature / hidden / class dims padded to 128 lanes.
    n_pad = _round_up(n, 128)
    f_pad = _round_up(f, 128)
    h_pad = _round_up(h, 128)
    c_pad = _round_up(c, 128)

    a_bf = _pad2d(a_hat, n_pad, n_pad).astype(jnp.bfloat16)
    x_bf = _pad2d(x, n_pad, f_pad).astype(jnp.bfloat16)
    w1_bf = _pad2d(w1, f_pad, h_pad).astype(jnp.bfloat16)
    w2_bf = _pad2d(w2, h_pad, h_pad).astype(jnp.bfloat16)
    w3_bf = _pad2d(w3, h_pad, c_pad).astype(jnp.bfloat16)
    b1_p = _pad2d(b1, 1, h_pad).astype(jnp.float32)
    b2_p = _pad2d(b2, 1, h_pad).astype(jnp.float32)
    b3_p = _pad2d(b3, 1, c_pad, fill=-1e30).astype(jnp.float32)  # mask padded classes

    cap = _vmem_cap_bytes()
    args = (a_bf, x_bf, w1_bf, b1_p, w2_bf, b2_p, w3_bf, b3_p,
            n_pad, f_pad, h_pad, c_pad, cap)

    if not force_tiled and _fused_vmem_bytes(n_pad, f_pad, h_pad, c_pad) <= 0.45 * cap:
        out_pad = _gcn_fused(*args)
    else:
        out_pad = _gcn_tiled(*args)
    return out_pad[:n, :c]


# ----------------------------- glue / reference -------------------------------


def build_norm_adj(edge_index, num_nodes):
    """Dense D^-1/2 (A + I) D^-1/2 matching PyG GCNConv's gcn_norm (add_self_loops=True)."""
    src = jnp.concatenate([edge_index[0], jnp.arange(num_nodes)])
    dst = jnp.concatenate([edge_index[1], jnp.arange(num_nodes)])
    adj = jnp.zeros((num_nodes, num_nodes), jnp.float32).at[dst, src].add(1.0)
    deg = jnp.sum(adj, axis=1)
    dinv = jnp.where(deg > 0, 1.0 / jnp.sqrt(deg), 0.0)
    return dinv[:, None] * adj * dinv[None, :]


def init_params(key, in_features, hidden, out_features):
    """GCNConv: glorot weight + zero bias; Linear: uniform."""
    k1, k2, k3, k4 = jax.random.split(key, 4)

    def glorot(k, fan_in, fan_out):
        lim = jnp.sqrt(6.0 / (fan_in + fan_out))
        return jax.random.uniform(k, (fan_in, fan_out), jnp.float32, -lim, lim)

    w1 = glorot(k1, in_features, hidden)
    b1 = jnp.zeros((1, hidden), jnp.float32)
    w2 = glorot(k2, hidden, hidden)
    b2 = jnp.zeros((1, hidden), jnp.float32)
    lim = 1.0 / jnp.sqrt(hidden)
    w3 = jax.random.uniform(k3, (hidden, out_features), jnp.float32, -lim, lim)
    b3 = jax.random.uniform(k4, (1, out_features), jnp.float32, -lim, lim)
    return (w1, b1, w2, b2, w3, b3)


def gcn_reference(a_hat, x, params):
    """Pure-JAX f32 reference of the same forward pass."""
    w1, b1, w2, b2, w3, b3 = params
    h = jnp.maximum(a_hat @ (x @ w1) + b1, 0.0)
    h = jnp.maximum(a_hat @ (h @ w2) + b2, 0.0)
    logits = h @ w3 + b3
    return jax.nn.softmax(logits, axis=-1)


if __name__ == "__main__":
    NUM_FEATURES = 37   # dataset.num_features
    HIDDEN = 32         # hidden_channels
    NUM_CLASSES = 3

    key = jax.random.PRNGKey(0)
    kp, kd = jax.random.split(key)
    params = init_params(kp, NUM_FEATURES, HIDDEN, NUM_CLASSES)

    def make_graph(k, num_nodes, extra_edges):
        kx, ke = jax.random.split(k)
        x = jax.random.normal(kx, (num_nodes, NUM_FEATURES), jnp.float32)
        ring_src = jnp.arange(num_nodes)
        ring_dst = (ring_src + 1) % num_nodes
        extra = jax.random.randint(ke, (2, extra_edges), 0, num_nodes)
        edge_index = jnp.concatenate(
            [jnp.stack([ring_src, ring_dst]), extra], axis=1).astype(jnp.int32)
        return build_norm_adj(edge_index, num_nodes), x

    k1, k2 = jax.random.split(kd)

    # --- Small whole graph: single fused pallas_call -------------------------
    a_hat, x = make_graph(k1, 64, 128)
    out = jax.block_until_ready(gcn_forward(a_hat, x, params))
    ref = gcn_reference(a_hat, x, params)
    assert out.shape == (64, NUM_CLASSES)
    assert jnp.allclose(jnp.sum(out, axis=-1), 1.0, atol=1e-2)   # approx reciprocal
    assert float(jnp.max(jnp.abs(out - ref))) < 3e-2             # bf16 operand tol

    # --- Larger graph: forced tiled path (projection + K-tiled aggregation) --
    a_hat2, x2 = make_graph(k2, 600, 1024)
    out2 = jax.block_until_ready(gcn_forward(a_hat2, x2, params, force_tiled=True))
    ref2 = gcn_reference(a_hat2, x2, params)
    assert out2.shape == (600, NUM_CLASSES)
    assert jnp.allclose(jnp.sum(out2, axis=-1), 1.0, atol=1e-2)
    assert float(jnp.max(jnp.abs(out2 - ref2))) < 5e-2           # longer bf16 contractions

    print("KERNEL_OK")
</pallas_src>

<mosaic_0001>
module attributes {stable_mosaic.version = 11 : i64} {
  func.func @gcn_fused_kernel(%arg0: i32, %arg1: memref<128x128xbf16, #tpu.memory_space<vmem>>, %arg2: memref<128x128xbf16, #tpu.memory_space<vmem>>, %arg3: memref<128x128xbf16, #tpu.memory_space<vmem>>, %arg4: memref<1x128xf32, #tpu.memory_space<vmem>>, %arg5: memref<128x128xbf16, #tpu.memory_space<vmem>>, %arg6: memref<1x128xf32, #tpu.memory_space<vmem>>, %arg7: memref<128x128xbf16, #tpu.memory_space<vmem>>, %arg8: memref<1x128xf32, #tpu.memory_space<vmem>>, %arg9: memref<128x128xf32, #tpu.memory_space<vmem>>) attributes {dimension_semantics = [#tpu.dimension_semantics<arbitrary>], iteration_bounds = array<i64: 1>, scalar_prefetch = 0 : i64, scratch_operands = 0 : i64, tpu.core_type = #tpu.core_type<tc>, window_params = [{pipeline_mode = #tpu.pipeline_mode<synchronous>, transform_indices = @transform_0, window_bounds = array<i64: 128, 128>}, {pipeline_mode = #tpu.pipeline_mode<synchronous>, transform_indices = @transform_1, window_bounds = array<i64: 128, 128>}, {pipeline_mode = #tpu.pipeline_mode<synchronous>, transform_indices = @transform_2, window_bounds = array<i64: 128, 128>}, {pipeline_mode = #tpu.pipeline_mode<synchronous>, transform_indices = @transform_3, window_bounds = array<i64: 1, 128>}, {pipeline_mode = #tpu.pipeline_mode<synchronous>, transform_indices = @transform_4, window_bounds = array<i64: 128, 128>}, {pipeline_mode = #tpu.pipeline_mode<synchronous>, transform_indices = @transform_5, window_bounds = array<i64: 1, 128>}, {pipeline_mode = #tpu.pipeline_mode<synchronous>, transform_indices = @transform_6, window_bounds = array<i64: 128, 128>}, {pipeline_mode = #tpu.pipeline_mode<synchronous>, transform_indices = @transform_7, window_bounds = array<i64: 1, 128>}, {pipeline_mode = #tpu.pipeline_mode<synchronous>, transform_indices = @transform_8, window_bounds = array<i64: 128, 128>}]} {
    %c0 = arith.constant 0 : index
    %c0_0 = arith.constant 0 : index
    %0 = vector.load %arg2[%c0, %c0_0] : memref<128x128xbf16, #tpu.memory_space<vmem>>, vector<128x128xbf16>
    %c0_1 = arith.constant 0 : index
    %c0_2 = arith.constant 0 : index
    %1 = vector.load %arg3[%c0_1, %c0_2] : memref<128x128xbf16, #tpu.memory_space<vmem>>, vector<128x128xbf16>
    %cst = arith.constant dense<0.000000e+00> : vector<128x128xf32>
    %2 = tpu.matmul %0, %1, %cst {dimension_numbers = #tpu.dot_dimension_numbers<[1], [0], [0], [1], [0, 0, 1, 1], [], []>} : vector<128x128xbf16>, vector<128x128xbf16>, vector<128x128xf32> -> vector<128x128xf32>
    %c0_3 = arith.constant 0 : index
    %c0_4 = arith.constant 0 : index
    %3 = vector.load %arg1[%c0_3, %c0_4] : memref<128x128xbf16, #tpu.memory_space<vmem>>, vector<128x128xbf16>
    %4 = arith.truncf %2 : vector<128x128xf32> to vector<128x128xbf16>
    %cst_5 = arith.constant dense<0.000000e+00> : vector<128x128xf32>
    %5 = tpu.matmul %3, %4, %cst_5 {dimension_numbers = #tpu.dot_dimension_numbers<[1], [0], [0], [1], [0, 0, 1, 1], [], []>} : vector<128x128xbf16>, vector<128x128xbf16>, vector<128x128xf32> -> vector<128x128xf32>
    %c0_6 = arith.constant 0 : index
    %c0_7 = arith.constant 0 : index
    %6 = vector.load %arg4[%c0_6, %c0_7] : memref<1x128xf32, #tpu.memory_space<vmem>>, vector<1x128xf32>
    %7 = vector.broadcast %6 : vector<1x128xf32> to vector<128x128xf32>
    %8 = arith.addf %5, %7 : vector<128x128xf32>
    %cst_8 = arith.constant 0.000000e+00 : f32
    %9 = vector.broadcast %cst_8 : f32 to vector<128x128xf32>
    %10 = arith.maximumf %8, %9 : vector<128x128xf32>
    %11 = arith.truncf %10 : vector<128x128xf32> to vector<128x128xbf16>
    %c0_9 = arith.constant 0 : index
    %c0_10 = arith.constant 0 : index
    %12 = vector.load %arg5[%c0_9, %c0_10] : memref<128x128xbf16, #tpu.memory_space<vmem>>, vector<128x128xbf16>
    %cst_11 = arith.constant dense<0.000000e+00> : vector<128x128xf32>
    %13 = tpu.matmul %11, %12, %cst_11 {dimension_numbers = #tpu.dot_dimension_numbers<[1], [0], [0], [1], [0, 0, 1, 1], [], []>} : vector<128x128xbf16>, vector<128x128xbf16>, vector<128x128xf32> -> vector<128x128xf32>
    %c0_12 = arith.constant 0 : index
    %c0_13 = arith.constant 0 : index
    %14 = vector.load %arg1[%c0_12, %c0_13] : memref<128x128xbf16, #tpu.memory_space<vmem>>, vector<128x128xbf16>
    %15 = arith.truncf %13 : vector<128x128xf32> to vector<128x128xbf16>
    %cst_14 = arith.constant dense<0.000000e+00> : vector<128x128xf32>
    %16 = tpu.matmul %14, %15, %cst_14 {dimension_numbers = #tpu.dot_dimension_numbers<[1], [0], [0], [1], [0, 0, 1, 1], [], []>} : vector<128x128xbf16>, vector<128x128xbf16>, vector<128x128xf32> -> vector<128x128xf32>
    %c0_15 = arith.constant 0 : index
    %c0_16 = arith.constant 0 : index
    %17 = vector.load %arg6[%c0_15, %c0_16] : memref<1x128xf32, #tpu.memory_space<vmem>>, vector<1x128xf32>
    %18 = vector.broadcast %17 : vector<1x128xf32> to vector<128x128xf32>
    %19 = arith.addf %16, %18 : vector<128x128xf32>
    %cst_17 = arith.constant 0.000000e+00 : f32
    %20 = vector.broadcast %cst_17 : f32 to vector<128x128xf32>
    %21 = arith.maximumf %19, %20 : vector<128x128xf32>
    %22 = arith.truncf %21 : vector<128x128xf32> to vector<128x128xbf16>
    %c0_18 = arith.constant 0 : index
    %c0_19 = arith.constant 0 : index
    %23 = vector.load %arg7[%c0_18, %c0_19] : memref<128x128xbf16, #tpu.memory_space<vmem>>, vector<128x128xbf16>
    %cst_20 = arith.constant dense<0.000000e+00> : vector<128x128xf32>
    %24 = tpu.matmul %22, %23, %cst_20 {dimension_numbers = #tpu.dot_dimension_numbers<[1], [0], [0], [1], [0, 0, 1, 1], [], []>} : vector<128x128xbf16>, vector<128x128xbf16>, vector<128x128xf32> -> vector<128x128xf32>
    %c0_21 = arith.constant 0 : index
    %c0_22 = arith.constant 0 : index
    %25 = vector.load %arg8[%c0_21, %c0_22] : memref<1x128xf32, #tpu.memory_space<vmem>>, vector<1x128xf32>
    %26 = vector.broadcast %25 : vector<1x128xf32> to vector<128x128xf32>
    %27 = arith.addf %24, %26 : vector<128x128xf32>
    %cst_23 = arith.constant dense<0xFF800000> : vector<128xf32>
    %28 = vector.multi_reduction <maximumf>, %27, %cst_23 [1] : vector<128x128xf32> to vector<128xf32>
    %29 = vector.shape_cast %28 : vector<128xf32> to vector<128x1xf32>
    %30 = vector.broadcast %29 : vector<128x1xf32> to vector<128x128xf32>
    %31 = arith.subf %27, %30 : vector<128x128xf32>
    %32 = math.exp %31 : vector<128x128xf32>
    %cst_24 = arith.constant dense<0.000000e+00> : vector<128xf32>
    %33 = vector.multi_reduction <add>, %32, %cst_24 [1] : vector<128x128xf32> to vector<128xf32>
    %34 = vector.shape_cast %33 : vector<128xf32> to vector<128x1xf32>
    %35 = tpu.reciprocal %34 {approx = true} : vector<128x1xf32> -> vector<128x1xf32>
    %36 = vector.broadcast %35 : vector<128x1xf32> to vector<128x128xf32>
    %37 = arith.mulf %32, %36 : vector<128x128xf32>
    %c0_25 = arith.constant 0 : index
    %c0_26 = arith.constant 0 : index
    %38 = vector.load %arg9[%c0_25, %c0_26] : memref<128x128xf32, #tpu.memory_space<vmem>>, vector<128x128xf32>
    tpu.vector_store %arg9[%c0_25, %c0_26], %37 {strides = array<i32>} : memref<128x128xf32, #tpu.memory_space<vmem>>, vector<128x128xf32>,
    return
  }
  func.func @transform_0(%arg0: i32) -> (i32, i32) {
    %c0_i32 = arith.constant 0 : i32
    %c0_i32_0 = arith.constant 0 : i32
    %c0_i32_1 = arith.constant 0 : i32
    return %c0_i32, %c0_i32_0 : i32, i32
  }
  func.func @transform_1(%arg0: i32) -> (i32, i32) {
    %c0_i32 = arith.constant 0 : i32
    %c0_i32_0 = arith.constant 0 : i32
    %c0_i32_1 = arith.constant 0 : i32
    return %c0_i32, %c0_i32_0 : i32, i32
  }
  func.func @transform_2(%arg0: i32) -> (i32, i32) {
    %c0_i32 = arith.constant 0 : i32
    %c0_i32_0 = arith.constant 0 : i32
    %c0_i32_1 = arith.constant 0 : i32
    return %c0_i32, %c0_i32_0 : i32, i32
  }
  func.func @transform_3(%arg0: i32) -> (i32, i32) {
    %c0_i32 = arith.constant 0 : i32
    %c0_i32_0 = arith.constant 0 : i32
    %c0_i32_1 = arith.constant 0 : i32
    return %c0_i32, %c0_i32_0 : i32, i32
  }
  func.func @transform_4(%arg0: i32) -> (i32, i32) {
    %c0_i32 = arith.constant 0 : i32
    %c0_i32_0 = arith.constant 0 : i32
    %c0_i32_1 = arith.constant 0 : i32
    return %c0_i32, %c0_i32_0 : i32, i32
  }
  func.func @transform_5(%arg0: i32) -> (i32, i32) {
    %c0_i32 = arith.constant 0 : i32
    %c0_i32_0 = arith.constant 0 : i32
    %c0_i32_1 = arith.constant 0 : i32
    return %c0_i32, %c0_i32_0 : i32, i32
  }
  func.func @transform_6(%arg0: i32) -> (i32, i32) {
    %c0_i32 = arith.constant 0 : i32
    %c0_i32_0 = arith.constant 0 : i32
    %c0_i32_1 = arith.constant 0 : i32
    return %c0_i32, %c0_i32_0 : i32, i32
  }
  func.func @transform_7(%arg0: i32) -> (i32, i32) {
    %c0_i32 = arith.constant 0 : i32
    %c0_i32_0 = arith.constant 0 : i32
    %c0_i32_1 = arith.constant 0 : i32
    return %c0_i32, %c0_i32_0 : i32, i32
  }
  func.func @transform_8(%arg0: i32) -> (i32, i32) {
    %c0_i32 = arith.constant 0 : i32
    %c0_i32_0 = arith.constant 0 : i32
    %c0_i32_1 = arith.constant 0 : i32
    return %c0_i32, %c0_i32_0 : i32, i32
  }
}

</mosaic_0001>

<llo_original>
// kernel: tpu_custom_call.1
$region0: #{tpu_custom_call.1}
  #allocation0 [shape = 'u32[]', space=smem, size = 0x4, offset = 0x4, fixed_abs, tag = 'smem constant byte address 0x4 - core index']
  #allocation1 [shape = 'u32[144,128]{1,0:T(1,128)}', space=vmem, size = 0x12000, scoped, tag = 'internal scratch']
  %s0 = inlined_call_operand.hbm [shape: bf16[128,128], index: 0, kind: input, shape index: {}]
  %s1 = inlined_call_operand.hbm [shape: bf16[128,128], index: 1, kind: input, shape index: {}]
  %s2 = inlined_call_operand.hbm [shape: bf16[128,128], index: 2, kind: input, shape index: {}]
  %s3 = inlined_call_operand.vmem [shape: f32[1,128], index: 3, kind: input, shape index: {}]
  %s4 = inlined_call_operand.hbm [shape: bf16[128,128], index: 4, kind: input, shape index: {}]
  %s5 = inlined_call_operand.vmem [shape: f32[1,128], index: 5, kind: input, shape index: {}]
  %s6 = inlined_call_operand.hbm [shape: bf16[128,128], index: 6, kind: input, shape index: {}]
  %s7 = inlined_call_operand.vmem [shape: f32[1,128], index: 7, kind: input, shape index: {}]
  %s8 = inlined_call_operand.hbm [shape: f32[128,128], index: 8, kind: output, shape index: {}]
  %s9 = sld [smem:[#allocation0]]
  $region62: #{tpu_custom_call.1} parent=0
    _
  %s11 = ssub.s32 1, %s9
  %s12 = scalar_select 0, %s11, %s9
  $region1: #{tpu_custom_call.1} parent=0
    #allocation2 [shape = 'u8[32768]{0}', space=vmem, size = 0x8000, scoped, tag = 'input window, operand 0, single buffered']
    #allocation3 [shape = 's32[1]{0}', space=sflag, size = 0x4, scoped, tag = 'scoped memory for tpu_custom_call.1']
    #allocation4 [shape = 's32[1]{0}', space=sflag, size = 0x4, scoped, tag = 'scoped memory for tpu_custom_call.1']
    #allocation5 [shape = 'u8[32768]{0}', space=vmem, size = 0x8000, scoped, tag = 'input window, operand 1, single buffered']
    #allocation6 [shape = 's32[1]{0}', space=sflag, size = 0x4, scoped, tag = 'scoped memory for tpu_custom_call.1']
    #allocation7 [shape = 'u8[32768]{0}', space=vmem, size = 0x8000, scoped, tag = 'input window, operand 2, single buffered']
    #allocation8 [shape = 'u8[32768]{0}', space=vmem, size = 0x8000, scoped, tag = 'input window, operand 4, single buffered']
    #allocation9 [shape = 's32[1]{0}', space=sflag, size = 0x4, scoped, tag = 'scoped memory for tpu_custom_call.1']
    #allocation10 [shape = 'u8[32768]{0}', space=vmem, size = 0x8000, scoped, tag = 'input window, operand 6, single buffered']
    #allocation11 [shape = 'u8[65536]{0}', space=vmem, size = 0x10000, scoped, tag = 'output window, operand 0, single buffered']
    %13 = vsyncpa [#allocation3], 0
    %14 = vsyncpa [#allocation6], 0
    %15 = vsyncpa [#allocation9], 0
    %16 = vsyncpa [#allocation4], 0
    // Predicated region
    $region2: #{tpu_custom_call.1} parent=1 // pred_check
      _
    $region3: #{tpu_custom_call.1} parent=1 // pred_check_branch
      %18 = sbr.rel (0) target = $region5
    $region4: #{tpu_custom_call.1} parent=1 // pred_region
      %s20 = ssub.s32 1024, 1024
      %21 = vsyncadd [#allocation3], %s20
      %s22 = sshll.u32 [#allocation2], 4
      %s23 = int_to_ptr.vmem [resolvable:$true] %s22
      %28 = dma.hbm_to_vmem [thread:$0]  %s0, 1024, %s23, [#allocation3], 64, 64, 4
    $region5: #{tpu_custom_call.1} parent=1 // pred_fallthru
      _
    // Predicated region
    $region6: #{tpu_custom_call.1} parent=1 // pred_check
      _
    $region7: #{tpu_custom_call.1} parent=1 // pred_check_branch
      %30 = sbr.rel (0) target = $region9
    $region8: #{tpu_custom_call.1} parent=1 // pred_region
      %s32 = ssub.s32 1024, 1024
      %33 = vsyncadd [#allocation6], %s32
      %s34 = sshll.u32 [#allocation5], 4
      %s35 = int_to_ptr.vmem [resolvable:$true] %s34
      %40 = dma.hbm_to_vmem [thread:$0]  %s1, 1024, %s35, [#allocation6], 64, 64, 4
    $region9: #{tpu_custom_call.1} parent=1 // pred_fallthru
      _
    // Predicated region
    $region10: #{tpu_custom_call.1} parent=1 // pred_check
      _
    $region11: #{tpu_custom_call.1} parent=1 // pred_check_branch
      %42 = sbr.rel (0) target = $region13
    $region12: #{tpu_custom_call.1} parent=1 // pred_region
      %s44 = ssub.s32 1024, 1024
      %45 = vsyncadd [#allocation6], %s44
      %s46 = sshll.u32 [#allocation7], 4
      %s47 = int_to_ptr.vmem [resolvable:$true] %s46
      %52 = dma.hbm_to_vmem [thread:$0]  %s2, 1024, %s47, [#allocation6], 64, 64, 4
    $region13: #{tpu_custom_call.1} parent=1 // pred_fallthru
      _
    // Predicated region
    $region14: #{tpu_custom_call.1} parent=1 // pred_check
      _
    $region15: #{tpu_custom_call.1} parent=1 // pred_check_branch
      %54 = sbr.rel (0) target = $region17
    $region16: #{tpu_custom_call.1} parent=1 // pred_region
      _
    $region17: #{tpu_custom_call.1} parent=1 // pred_fallthru
      _
    // Predicated region
    $region18: #{tpu_custom_call.1} parent=1 // pred_check
      _
    $region19: #{tpu_custom_call.1} parent=1 // pred_check_branch
      %56 = sbr.rel (0) target = $region21
    $region20: #{tpu_custom_call.1} parent=1 // pred_region
      %s58 = ssub.s32 1024, 1024
      %59 = vsyncadd [#allocation9], %s58
      %s60 = sshll.u32 [#allocation8], 4
      %s61 = int_to_ptr.vmem [resolvable:$true] %s60
      %66 = dma.hbm_to_vmem [thread:$0]  %s4, 1024, %s61, [#allocation9], 64, 64, 4
    $region21: #{tpu_custom_call.1} parent=1 // pred_fallthru
      _
    // Predicated region
    $region22: #{tpu_custom_call.1} parent=1 // pred_check
      _
    $region23: #{tpu_custom_call.1} parent=1 // pred_check_branch
      %68 = sbr.rel (0) target = $region25
    $region24: #{tpu_custom_call.1} parent=1 // pred_region
      _
    $region25: #{tpu_custom_call.1} parent=1 // pred_fallthru
      _
    // Predicated region
    $region26: #{tpu_custom_call.1} parent=1 // pred_check
      _
    $region27: #{tpu_custom_call.1} parent=1 // pred_check_branch
      %70 = sbr.rel (0) target = $region29
    $region28: #{tpu_custom_call.1} parent=1 // pred_region
      %s72 = ssub.s32 1024, 1024
      %73 = vsyncadd [#allocation9], %s72
      %s74 = sshll.u32 [#allocation10], 4
      %s75 = int_to_ptr.vmem [resolvable:$true] %s74
      %80 = dma.hbm_to_vmem [thread:$0]  %s6, 1024, %s75, [#allocation9], 64, 64, 4
    $region29: #{tpu_custom_call.1} parent=1 // pred_fallthru
      _
    // Predicated region
    $region30: #{tpu_custom_call.1} parent=1 // pred_check
      _
    $region31: #{tpu_custom_call.1} parent=1 // pred_check_branch
      %82 = sbr.rel (0) target = $region33
    $region32: #{tpu_custom_call.1} parent=1 // pred_region
      _
    $region33: #{tpu_custom_call.1} parent=1 // pred_fallthru
      _
    // Predicated region
    $region34: #{tpu_custom_call.1} parent=1 // pred_check
      _
    $region35: #{tpu_custom_call.1} parent=1 // pred_check_branch
      %84 = sbr.rel (0) target = $region37
    $region36: #{tpu_custom_call.1} parent=1 // pred_region
      %85 = dma.done [#allocation3], 1024
    $region37: #{tpu_custom_call.1} parent=1 // pred_fallthru
      _
    // Predicated region
    $region38: #{tpu_custom_call.1} parent=1 // pred_check
      _
    $region39: #{tpu_custom_call.1} parent=1 // pred_check_branch
      %87 = sbr.rel (0) target = $region41
    $region40: #{tpu_custom_call.1} parent=1 // pred_region
      %88 = dma.done [#allocation6], 1024
    $region41: #{tpu_custom_call.1} parent=1 // pred_fallthru
      _
    // Predicated region
    $region42: #{tpu_custom_call.1} parent=1 // pred_check
      _
    $region43: #{tpu_custom_call.1} parent=1 // pred_check_branch
      %90 = sbr.rel (0) target = $region45
    $region44: #{tpu_custom_call.1} parent=1 // pred_region
      %91 = dma.done [#allocation6], 1024
    $region45: #{tpu_custom_call.1} parent=1 // pred_fallthru
      _
    // Predicated region
    $region46: #{tpu_custom_call.1} parent=1 // pred_check
      _
    $region47: #{tpu_custom_call.1} parent=1 // pred_check_branch
      %93 = sbr.rel (0) target = $region49
    $region48: #{tpu_custom_call.1} parent=1 // pred_region
      %94 = dma.done [#allocation9], 1024
    $region49: #{tpu_custom_call.1} parent=1 // pred_fallthru
      _
    // Predicated region
    $region50: #{tpu_custom_call.1} parent=1 // pred_check
      _
    $region51: #{tpu_custom_call.1} parent=1 // pred_check_branch
      %96 = sbr.rel (0) target = $region53
    $region52: #{tpu_custom_call.1} parent=1 // pred_region
      %97 = dma.done [#allocation9], 1024
    $region53: #{tpu_custom_call.1} parent=1 // pred_fallthru
      _
    %v99 = vld [vmem:[#allocation5] sm:$0xf]
    %v100 = vld [vmem:[#allocation5 + $0x4] sm:$0xf]
    %v101 = vld [vmem:[#allocation5 + $0x8] sm:$0xf]
    %v102 = vld [vmem:[#allocation5 + $0xc] sm:$0xf]
    %v103 = vld [vmem:[#allocation5 + $0x10] sm:$0xf]
    %v104 = vld [vmem:[#allocation5 + $0x14] sm:$0xf]
    %v105 = vld [vmem:[#allocation5 + $0x18] sm:$0xf]
    %v106 = vld [vmem:[#allocation5 + $0x1c] sm:$0xf]
    %v107 = vld [vmem:[#allocation5 + $0x20] sm:$0xf]
    %v108 = vld [vmem:[#allocation5 + $0x24] sm:$0xf]
    %v109 = vld [vmem:[#allocation5 + $0x28] sm:$0xf]
    %v110 = vld [vmem:[#allocation5 + $0x2c] sm:$0xf]
    %v111 = vld [vmem:[#allocation5 + $0x30] sm:$0xf]
    %v112 = vld [vmem:[#allocation5 + $0x34] sm:$0xf]
    %v113 = vld [vmem:[#allocation5 + $0x38] sm:$0xf]
    %v114 = vld [vmem:[#allocation5 + $0x3c] sm:$0xf]
    %v115 = vld [vmem:[#allocation7] sm:$0xf]
    %v116 = vld [vmem:[#allocation7 + $0x4] sm:$0xf]
    %v117 = vld [vmem:[#allocation7 + $0x8] sm:$0xf]
    %v118 = vld [vmem:[#allocation7 + $0xc] sm:$0xf]
    %v119 = vld [vmem:[#allocation7 + $0x10] sm:$0xf]
    %v120 = vld [vmem:[#allocation7 + $0x14] sm:$0xf]
    %v121 = vld [vmem:[#allocation7 + $0x18] sm:$0xf]
    %v122 = vld [vmem:[#allocation7 + $0x1c] sm:$0xf]
    %v123 = vld [vmem:[#allocation7 + $0x20] sm:$0xf]
    %v124 = vld [vmem:[#allocation7 + $0x24] sm:$0xf]
    %v125 = vld [vmem:[#allocation7 + $0x28] sm:$0xf]
    %v126 = vld [vmem:[#allocation7 + $0x2c] sm:$0xf]
    %v127 = vld [vmem:[#allocation7 + $0x30] sm:$0xf]
    %v128 = vld [vmem:[#allocation7 + $0x34] sm:$0xf]
    %v129 = vld [vmem:[#allocation7 + $0x38] sm:$0xf]
    %v130 = vld [vmem:[#allocation7 + $0x3c] sm:$0xf]
    %v147 = vunpack.c.l.b16 %v99
    %v148 = vunpack.c.l.b16 %v100
    %v149 = vunpack.c.l.b16 %v101
    %v150 = vunpack.c.l.b16 %v102
    %v151 = vunpack.c.l.b16 %v103
    %v152 = vunpack.c.l.b16 %v104
    %v153 = vunpack.c.l.b16 %v105
    %v154 = vunpack.c.l.b16 %v106
    %v155 = vunpack.c.l.b16 %v107
    %v156 = vunpack.c.l.b16 %v108
    %v157 = vunpack.c.l.b16 %v109
    %v158 = vunpack.c.l.b16 %v110
    %v159 = vunpack.c.l.b16 %v111
    %v160 = vunpack.c.l.b16 %v112
    %v161 = vunpack.c.l.b16 %v113
    %v162 = vunpack.c.l.b16 %v114
    %v163 = vpack.c.b16 %v148, %v147
    %v164 = vpack.c.b16 %v150, %v149
    %v165 = vpack.c.b16 %v152, %v151
    %v166 = vpack.c.b16 %v154, %v153
    %v167 = vpack.c.b16 %v156, %v155
    %v168 = vpack.c.b16 %v158, %v157
    %v169 = vpack.c.b16 %v160, %v159
    %v170 = vpack.c.b16 %v162, %v161
    %v195 = vunpack.c.l.b16 %v115
    %v196 = vunpack.c.l.b16 %v116
    %v197 = vunpack.c.l.b16 %v117
    %v198 = vunpack.c.l.b16 %v118
    %v199 = vunpack.c.l.b16 %v119
    %v200 = vunpack.c.l.b16 %v120
    %v201 = vunpack.c.l.b16 %v121
    %v202 = vunpack.c.l.b16 %v122
    %v203 = vunpack.c.l.b16 %v123
    %v204 = vunpack.c.l.b16 %v124
    %v205 = vunpack.c.l.b16 %v125
    %v206 = vunpack.c.l.b16 %v126
    %v207 = vunpack.c.l.b16 %v127
    %v208 = vunpack.c.l.b16 %v128
    %v209 = vunpack.c.l.b16 %v129
    %v210 = vunpack.c.l.b16 %v130
    %v211 = vpack.c.b16 %v196, %v195
    %v212 = vpack.c.b16 %v198, %v197
    %v213 = vpack.c.b16 %v200, %v199
    %v214 = vpack.c.b16 %v202, %v201
    %v215 = vpack.c.b16 %v204, %v203
    %v216 = vpack.c.b16 %v206, %v205
    %v217 = vpack.c.b16 %v208, %v207
    %v218 = vpack.c.b16 %v210, %v209
    %227 = vmatprep.subr.bf16.mxu0 0
    %228 = vmatpush1.bf16.msra.mxu0 %v211
    %229 = vmatprep.subr.bf16.mxu0 0
    %230 = vmatpush1.bf16.msra.mxu0 %v212
    %231 = vmatprep.subr.bf16.mxu0 0
    %232 = vmatpush1.bf16.msra.mxu0 %v213
    %233 = vmatprep.subr.bf16.mxu0 0
    %234 = vmatpush1.bf16.msra.mxu0 %v214
    %235 = vmatprep.subr.bf16.mxu0 0
    %236 = vmatpush1.bf16.msra.mxu0 %v215
    %237 = vmatprep.subr.bf16.mxu0 0
    %238 = vmatpush1.bf16.msra.mxu0 %v216
    %239 = vmatprep.subr.bf16.mxu0 0
    %240 = vmatpush1.bf16.msra.mxu0 %v217
    %241 = vmatprep.subr.bf16.mxu0 0
    %242 = vmatpush1.bf16.msra.mxu0 %v218
    %243 = vmatprep.subr.bf16.mxu0 0
    %244 = vmatpush1.bf16.msra.mxu0 0
    %245 = vmatprep.subr.bf16.mxu0 0
    %246 = vmatpush1.bf16.msra.mxu0 0
    %247 = vmatprep.subr.bf16.mxu0 0
    %248 = vmatpush1.bf16.msra.mxu0 0
    %249 = vmatprep.subr.bf16.mxu0 0
    %250 = vmatpush1.bf16.msra.mxu0 0
    %251 = vmatprep.subr.bf16.mxu0 0
    %252 = vmatpush1.bf16.msra.mxu0 0
    %253 = vmatprep.subr.bf16.mxu0 0
    %254 = vmatpush1.bf16.msra.mxu0 0
    %255 = vmatprep.subr.bf16.mxu0 0
    %256 = vmatpush1.bf16.msra.mxu0 0
    %257 = vmatprep.subr.bf16.mxu0 0
    %258 = vmatpush1.bf16.msra.mxu0 0
    %259 = vmatprep.mubr.bf16.mxu0 0
    %260 = vmatmul.mubr.bf16.gmra.mrb[0].mxu0 %v163
    %v261 = vpop.f32.mrb[0].mxu0
    %v262 = vadd.f32 0.0, %v261
    %v263 = vpop.f32.mrb[0].mxu0
    %v264 = vpop.f32.mrb[0].mxu0
    %v265 = vadd.f32 0.0, %v264
    %v266 = vpop.f32.mrb[0].mxu0
    %267 = vmatprep.mubr.bf16.mxu0 0
    %268 = vmatmul.mubr.bf16.gmra.mrb[0].mxu0 %v164
    %v269 = vpop.f32.mrb[0].mxu0
    %v270 = vadd.f32 0.0, %v269
    %v271 = vpop.f32.mrb[0].mxu0
    %v272 = vpop.f32.mrb[0].mxu0
    %v273 = vadd.f32 0.0, %v272
    %v274 = vpop.f32.mrb[0].mxu0
    %275 = vmatprep.mubr.bf16.mxu0 0
    %276 = vmatmul.mubr.bf16.gmra.mrb[0].mxu0 %v165
    %v277 = vpop.f32.mrb[0].mxu0
    %v278 = vadd.f32 0.0, %v277
    %v279 = vpop.f32.mrb[0].mxu0
    %v280 = vpop.f32.mrb[0].mxu0
    %v281 = vadd.f32 0.0, %v280
    %v282 = vpop.f32.mrb[0].mxu0
    %283 = vmatprep.mubr.bf16.mxu0 0
    %284 = vmatmul.mubr.bf16.gmra.mrb[0].mxu0 %v166
    %v285 = vpop.f32.mrb[0].mxu0
    %v286 = vadd.f32 0.0, %v285
    %v287 = vpop.f32.mrb[0].mxu0
    %v288 = vpop.f32.mrb[0].mxu0
    %v289 = vadd.f32 0.0, %v288
    %v290 = vpop.f32.mrb[0].mxu0
    %291 = vmatprep.mubr.bf16.mxu0 0
    %292 = vmatmul.mubr.bf16.gmra.mrb[0].mxu0 %v167
    %v293 = vpop.f32.mrb[0].mxu0
    %v294 = vadd.f32 0.0, %v293
    %v295 = vpop.f32.mrb[0].mxu0
    %v296 = vpop.f32.mrb[0].mxu0
    %v297 = vadd.f32 0.0, %v296
    %v298 = vpop.f32.mrb[0].mxu0
    %299 = vmatprep.mubr.bf16.mxu0 0
    %300 = vmatmul.mubr.bf16.gmra.mrb[0].mxu0 %v168
    %v301 = vpop.f32.mrb[0].mxu0
    %v302 = vadd.f32 0.0, %v301
    %v303 = vpop.f32.mrb[0].mxu0
    %v304 = vpop.f32.mrb[0].mxu0
    %v305 = vadd.f32 0.0, %v304
    %v306 = vpop.f32.mrb[0].mxu0
    %307 = vmatprep.mubr.bf16.mxu0 0
    %308 = vmatmul.mubr.bf16.gmra.mrb[0].mxu0 %v169
    %v309 = vpop.f32.mrb[0].mxu0
    %v310 = vadd.f32 0.0, %v309
    %v311 = vpop.f32.mrb[0].mxu0
    %v312 = vpop.f32.mrb[0].mxu0
    %v313 = vadd.f32 0.0, %v312
    %v314 = vpop.f32.mrb[0].mxu0
    %315 = vmatprep.mubr.bf16.mxu0 0
    %316 = vmatmul.mubr.bf16.gmra.mrb[0].mxu0 %v170
    %v317 = vpop.f32.mrb[0].mxu0
    %v318 = vadd.f32 0.0, %v317
    %v319 = vpop.f32.mrb[0].mxu0
    %v320 = vpop.f32.mrb[0].mxu0
    %v321 = vadd.f32 0.0, %v320
    %v322 = vpop.f32.mrb[0].mxu0
    %323 = vdwg.mxu0
    %v324 = vld [vmem:[#allocation2] sm:$0xf]
    %v325 = vld [vmem:[#allocation2 + $0x4] sm:$0xf]
    %v326 = vld [vmem:[#allocation2 + $0x8] sm:$0xf]
    %v327 = vld [vmem:[#allocation2 + $0xc] sm:$0xf]
    %v328 = vld [vmem:[#allocation2 + $0x10] sm:$0xf]
    %v329 = vld [vmem:[#allocation2 + $0x14] sm:$0xf]
    %v330 = vld [vmem:[#allocation2 + $0x18] sm:$0xf]
    %v331 = vld [vmem:[#allocation2 + $0x1c] sm:$0xf]
    %v332 = vld [vmem:[#allocation2 + $0x20] sm:$0xf]
    %v333 = vld [vmem:[#allocation2 + $0x24] sm:$0xf]
    %v334 = vld [vmem:[#allocation2 + $0x28] sm:$0xf]
    %v335 = vld [vmem:[#allocation2 + $0x2c] sm:$0xf]
    %v336 = vld [vmem:[#allocation2 + $0x30] sm:$0xf]
    %v337 = vld [vmem:[#allocation2 + $0x34] sm:$0xf]
    %v338 = vld [vmem:[#allocation2 + $0x38] sm:$0xf]
    %v339 = vld [vmem:[#allocation2 + $0x3c] sm:$0xf]
    %v340 = vpack.c.bf16 %v265, %v262
    %v341 = vpack.c.bf16 %v273, %v270
    %v342 = vpack.c.bf16 %v281, %v278
    %v343 = vpack.c.bf16 %v289, %v286
    %v344 = vpack.c.bf16 %v297, %v294
    %v345 = vpack.c.bf16 %v305, %v302
    %v346 = vpack.c.bf16 %v313, %v310
    %v347 = vpack.c.bf16 %v321, %v318
    %v348 = vld [vmem:[%s3] sm:$0x1]
    %v350 = vlaneseq
    %v351 = vshrl.u32 %v350, 7
    %v352 = vsub.s32 0, %v351
    %v353 = vrot.slane %v348, %v352
    %v371 = vunpack.c.l.b16 %v324
    %v372 = vunpack.c.l.b16 %v325
    %v373 = vunpack.c.l.b16 %v326
    %v374 = vunpack.c.l.b16 %v327
    %v375 = vunpack.c.l.b16 %v328
    %v376 = vunpack.c.l.b16 %v329
    %v377 = vunpack.c.l.b16 %v330
    %v378 = vunpack.c.l.b16 %v331
    %v379 = vunpack.c.l.b16 %v332
    %v380 = vunpack.c.l.b16 %v333
    %v381 = vunpack.c.l.b16 %v334
    %v382 = vunpack.c.l.b16 %v335
    %v383 = vunpack.c.l.b16 %v336
    %v384 = vunpack.c.l.b16 %v337
    %v385 = vunpack.c.l.b16 %v338
    %v386 = vunpack.c.l.b16 %v339
    %v387 = vpack.c.b16 %v372, %v371
    %v388 = vpack.c.b16 %v374, %v373
    %v389 = vpack.c.b16 %v376, %v375
    %v390 = vpack.c.b16 %v378, %v377
    %v391 = vpack.c.b16 %v380, %v379
    %v392 = vpack.c.b16 %v382, %v381
    %v393 = vpack.c.b16 %v384, %v383
    %v394 = vpack.c.b16 %v386, %v385
    %403 = vmatprep.subr.bf16.mxu0 0
    %404 = vmatpush1.bf16.msra.mxu0 %v340
    %405 = vmatprep.subr.bf16.mxu0 0
    %406 = vmatpush1.bf16.msra.mxu0 %v341
    %407 = vmatprep.subr.bf16.mxu0 0
    %408 = vmatpush1.bf16.msra.mxu0 %v342
    %409 = vmatprep.subr.bf16.mxu0 0
    %410 = vmatpush1.bf16.msra.mxu0 %v343
    %411 = vmatprep.subr.bf16.mxu0 0
    %412 = vmatpush1.bf16.msra.mxu0 %v344
    %413 = vmatprep.subr.bf16.mxu0 0
    %414 = vmatpush1.bf16.msra.mxu0 %v345
    %415 = vmatprep.subr.bf16.mxu0 0
    %416 = vmatpush1.bf16.msra.mxu0 %v346
    %417 = vmatprep.subr.bf16.mxu0 0
    %418 = vmatpush1.bf16.msra.mxu0 %v347
    %419 = vmatprep.subr.bf16.mxu0 0
    %420 = vmatpush1.bf16.msra.mxu0 0
    %421 = vmatprep.subr.bf16.mxu0 0
    %422 = vmatpush1.bf16.msra.mxu0 0
    %423 = vmatprep.subr.bf16.mxu0 0
    %424 = vmatpush1.bf16.msra.mxu0 0
    %425 = vmatprep.subr.bf16.mxu0 0
    %426 = vmatpush1.bf16.msra.mxu0 0
    %427 = vmatprep.subr.bf16.mxu0 0
    %428 = vmatpush1.bf16.msra.mxu0 0
    %429 = vmatprep.subr.bf16.mxu0 0
    %430 = vmatpush1.bf16.msra.mxu0 0
    %431 = vmatprep.subr.bf16.mxu0 0
    %432 = vmatpush1.bf16.msra.mxu0 0
    %433 = vmatprep.subr.bf16.mxu0 0
    %434 = vmatpush1.bf16.msra.mxu0 0
    %435 = vmatprep.mubr.bf16.mxu0 0
    %436 = vmatmul.mubr.bf16.gmra.mrb[0].mxu0 %v387
    %v437 = vpop.f32.mrb[0].mxu0
    %v438 = vadd.f32 %v353, %v437
    %v439 = vpop.f32.mrb[0].mxu0
    %v440 = vpop.f32.mrb[0].mxu0
    %v441 = vadd.f32 %v353, %v440
    %v442 = vpop.f32.mrb[0].mxu0
    %443 = vmatprep.mubr.bf16.mxu0 0
    %444 = vmatmul.mubr.bf16.gmra.mrb[0].mxu0 %v388
    %v445 = vpop.f32.mrb[0].mxu0
    %v446 = vadd.f32 %v353, %v445
    %v447 = vpop.f32.mrb[0].mxu0
    %v448 = vpop.f32.mrb[0].mxu0
    %v449 = vadd.f32 %v353, %v448
    %v450 = vpop.f32.mrb[0].mxu0
    %451 = vmatprep.mubr.bf16.mxu0 0
    %452 = vmatmul.mubr.bf16.gmra.mrb[0].mxu0 %v389
    %v453 = vpop.f32.mrb[0].mxu0
    %v454 = vadd.f32 %v353, %v453
    %v455 = vpop.f32.mrb[0].mxu0
    %v456 = vpop.f32.mrb[0].mxu0
    %v457 = vadd.f32 %v353, %v456
    %v458 = vpop.f32.mrb[0].mxu0
    %459 = vmatprep.mubr.bf16.mxu0 0
    %460 = vmatmul.mubr.bf16.gmra.mrb[0].mxu0 %v390
    %v461 = vpop.f32.mrb[0].mxu0
    %v462 = vadd.f32 %v353, %v461
    %v463 = vpop.f32.mrb[0].mxu0
    %v464 = vpop.f32.mrb[0].mxu0
    %v465 = vadd.f32 %v353, %v464
    %v466 = vpop.f32.mrb[0].mxu0
    %467 = vmatprep.mubr.bf16.mxu0 0
    %468 = vmatmul.mubr.bf16.gmra.mrb[0].mxu0 %v391
    %v469 = vpop.f32.mrb[0].mxu0
    %v470 = vadd.f32 %v353, %v469
    %v471 = vpop.f32.mrb[0].mxu0
    %v472 = vpop.f32.mrb[0].mxu0
    %v473 = vadd.f32 %v353, %v472
    %v474 = vpop.f32.mrb[0].mxu0
    %475 = vmatprep.mubr.bf16.mxu0 0
    %476 = vmatmul.mubr.bf16.gmra.mrb[0].mxu0 %v392
    %v477 = vpop.f32.mrb[0].mxu0
    %v478 = vadd.f32 %v353, %v477
    %v479 = vpop.f32.mrb[0].mxu0
    %v480 = vpop.f32.mrb[0].mxu0
    %v481 = vadd.f32 %v353, %v480
    %v482 = vpop.f32.mrb[0].mxu0
    %483 = vmatprep.mubr.bf16.mxu0 0
    %484 = vmatmul.mubr.bf16.gmra.mrb[0].mxu0 %v393
    %v485 = vpop.f32.mrb[0].mxu0
    %v486 = vadd.f32 %v353, %v485
    %v487 = vpop.f32.mrb[0].mxu0
    %v488 = vpop.f32.mrb[0].mxu0
    %v489 = vadd.f32 %v353, %v488
    %v490 = vpop.f32.mrb[0].mxu0
    %491 = vmatprep.mubr.bf16.mxu0 0
    %492 = vmatmul.mubr.bf16.gmra.mrb[0].mxu0 %v394
    %v493 = vpop.f32.mrb[0].mxu0
    %v494 = vadd.f32 %v353, %v493
    %v495 = vpop.f32.mrb[0].mxu0
    %v496 = vpop.f32.mrb[0].mxu0
    %v497 = vadd.f32 %v353, %v496
    %v498 = vpop.f32.mrb[0].mxu0
    %499 = vdwg.mxu0
    %v500 = vmax.f32 %v438, 0.0
    %v501 = vmax.f32 %v441, 0.0
    %v502 = vmax.f32 %v446, 0.0
    %v503 = vmax.f32 %v449, 0.0
    %v504 = vmax.f32 %v454, 0.0
    %v505 = vmax.f32 %v457, 0.0
    %v506 = vmax.f32 %v462, 0.0
    %v507 = vmax.f32 %v465, 0.0
    %v508 = vmax.f32 %v470, 0.0
    %v509 = vmax.f32 %v473, 0.0
    %v510 = vmax.f32 %v478, 0.0
    %v511 = vmax.f32 %v481, 0.0
    %v512 = vmax.f32 %v486, 0.0
    %v513 = vmax.f32 %v489, 0.0
    %v514 = vmax.f32 %v494, 0.0
    %v515 = vmax.f32 %v497, 0.0
    %v516 = vpack.c.bf16 %v501, %v500
    %v517 = vpack.c.bf16 %v503, %v502
    %v518 = vpack.c.bf16 %v505, %v504
    %v519 = vpack.c.bf16 %v507, %v506
    %v520 = vpack.c.bf16 %v509, %v508
    %v521 = vpack.c.bf16 %v511, %v510
    %v522 = vpack.c.bf16 %v513, %v512
    %v523 = vpack.c.bf16 %v515, %v514
    %v524 = vld [vmem:[#allocation8] sm:$0xf]
    %v525 = vld [vmem:[#allocation8 + $0x4] sm:$0xf]
    %v526 = vld [vmem:[#allocation8 + $0x8] sm:$0xf]
    %v527 = vld [vmem:[#allocation8 + $0xc] sm:$0xf]
    %v528 = vld [vmem:[#allocation8 + $0x10] sm:$0xf]
    %v529 = vld [vmem:[#allocation8 + $0x14] sm:$0xf]
    %v530 = vld [vmem:[#allocation8 + $0x18] sm:$0xf]
    %v531 = vld [vmem:[#allocation8 + $0x1c] sm:$0xf]
    %v532 = vld [vmem:[#allocation8 + $0x20] sm:$0xf]
    %v533 = vld [vmem:[#allocation8 + $0x24] sm:$0xf]
    %v534 = vld [vmem:[#allocation8 + $0x28] sm:$0xf]
    %v535 = vld [vmem:[#allocation8 + $0x2c] sm:$0xf]
    %v536 = vld [vmem:[#allocation8 + $0x30] sm:$0xf]
    %v537 = vld [vmem:[#allocation8 + $0x34] sm:$0xf]
    %v538 = vld [vmem:[#allocation8 + $0x38] sm:$0xf]
    %v539 = vld [vmem:[#allocation8 + $0x3c] sm:$0xf]
    %v556 = vunpack.c.l.b16 %v524
    %v557 = vunpack.c.l.b16 %v525
    %v558 = vunpack.c.l.b16 %v526
    %v559 = vunpack.c.l.b16 %v527
    %v560 = vunpack.c.l.b16 %v528
    %v561 = vunpack.c.l.b16 %v529
    %v562 = vunpack.c.l.b16 %v530
    %v563 = vunpack.c.l.b16 %v531
    %v564 = vunpack.c.l.b16 %v532
    %v565 = vunpack.c.l.b16 %v533
    %v566 = vunpack.c.l.b16 %v534
    %v567 = vunpack.c.l.b16 %v535
    %v568 = vunpack.c.l.b16 %v536
    %v569 = vunpack.c.l.b16 %v537
    %v570 = vunpack.c.l.b16 %v538
    %v571 = vunpack.c.l.b16 %v539
    %v572 = vpack.c.b16 %v557, %v556
    %v573 = vpack.c.b16 %v559, %v558
    %v574 = vpack.c.b16 %v561, %v560
    %v575 = vpack.c.b16 %v563, %v562
    %v576 = vpack.c.b16 %v565, %v564
    %v577 = vpack.c.b16 %v567, %v566
    %v578 = vpack.c.b16 %v569, %v568
    %v579 = vpack.c.b16 %v571, %v570
    %588 = vmatprep.subr.bf16.mxu0 0
    %589 = vmatpush1.bf16.msra.mxu0 %v572
    %590 = vmatprep.subr.bf16.mxu0 0
    %591 = vmatpush1.bf16.msra.mxu0 %v573
    %592 = vmatprep.subr.bf16.mxu0 0
    %593 = vmatpush1.bf16.msra.mxu0 %v574
    %594 = vmatprep.subr.bf16.mxu0 0
    %595 = vmatpush1.bf16.msra.mxu0 %v575
    %596 = vmatprep.subr.bf16.mxu0 0
    %597 = vmatpush1.bf16.msra.mxu0 %v576
    %598 = vmatprep.subr.bf16.mxu0 0
    %599 = vmatpush1.bf16.msra.mxu0 %v577
    %600 = vmatprep.subr.bf16.mxu0 0
    %601 = vmatpush1.bf16.msra.mxu0 %v578
    %602 = vmatprep.subr.bf16.mxu0 0
    %603 = vmatpush1.bf16.msra.mxu0 %v579
    %604 = vmatprep.subr.bf16.mxu0 0
    %605 = vmatpush1.bf16.msra.mxu0 0
    %606 = vmatprep.subr.bf16.mxu0 0
    %607 = vmatpush1.bf16.msra.mxu0 0
    %608 = vmatprep.subr.bf16.mxu0 0
    %609 = vmatpush1.bf16.msra.mxu0 0
    %610 = vmatprep.subr.bf16.mxu0 0
    %611 = vmatpush1.bf16.msra.mxu0 0
    %612 = vmatprep.subr.bf16.mxu0 0
    %613 = vmatpush1.bf16.msra.mxu0 0
    %614 = vmatprep.subr.bf16.mxu0 0
    %615 = vmatpush1.bf16.msra.mxu0 0
    %616 = vmatprep.subr.bf16.mxu0 0
    %617 = vmatpush1.bf16.msra.mxu0 0
    %618 = vmatprep.subr.bf16.mxu0 0
    %619 = vmatpush1.bf16.msra.mxu0 0
    %620 = vmatprep.mubr.bf16.mxu0 0
    %621 = vmatmul.mubr.bf16.gmra.mrb[0].mxu0 %v516
    %v622 = vpop.f32.mrb[0].mxu0
    %v623 = vadd.f32 0.0, %v622
    %v624 = vpop.f32.mrb[0].mxu0
    %v625 = vpop.f32.mrb[0].mxu0
    %v626 = vadd.f32 0.0, %v625
    %v627 = vpop.f32.mrb[0].mxu0
    %628 = vmatprep.mubr.bf16.mxu0 0
    %629 = vmatmul.mubr.bf16.gmra.mrb[0].mxu0 %v517
    %v630 = vpop.f32.mrb[0].mxu0
    %v631 = vadd.f32 0.0, %v630
    %v632 = vpop.f32.mrb[0].mxu0
    %v633 = vpop.f32.mrb[0].mxu0
    %v634 = vadd.f32 0.0, %v633
    %v635 = vpop.f32.mrb[0].mxu0
    %636 = vmatprep.mubr.bf16.mxu0 0
    %637 = vmatmul.mubr.bf16.gmra.mrb[0].mxu0 %v518
    %v638 = vpop.f32.mrb[0].mxu0
    %v639 = vadd.f32 0.0, %v638
    %v640 = vpop.f32.mrb[0].mxu0
    %v641 = vpop.f32.mrb[0].mxu0
    %v642 = vadd.f32 0.0, %v641
    %v643 = vpop.f32.mrb[0].mxu0
    %644 = vmatprep.mubr.bf16.mxu0 0
    %645 = vmatmul.mubr.bf16.gmra.mrb[0].mxu0 %v519
    %v646 = vpop.f32.mrb[0].mxu0
    %v647 = vadd.f32 0.0, %v646
    %v648 = vpop.f32.mrb[0].mxu0
    %v649 = vpop.f32.mrb[0].mxu0
    %v650 = vadd.f32 0.0, %v649
    %v651 = vpop.f32.mrb[0].mxu0
    %652 = vmatprep.mubr.bf16.mxu0 0
    %653 = vmatmul.mubr.bf16.gmra.mrb[0].mxu0 %v520
    %v654 = vpop.f32.mrb[0].mxu0
    %v655 = vadd.f32 0.0, %v654
    %v656 = vpop.f32.mrb[0].mxu0
    %v657 = vpop.f32.mrb[0].mxu0
    %v658 = vadd.f32 0.0, %v657
    %v659 = vpop.f32.mrb[0].mxu0
    %660 = vmatprep.mubr.bf16.mxu0 0
    %661 = vmatmul.mubr.bf16.gmra.mrb[0].mxu0 %v521
    %v662 = vpop.f32.mrb[0].mxu0
    %v663 = vadd.f32 0.0, %v662
    %v664 = vpop.f32.mrb[0].mxu0
    %v665 = vpop.f32.mrb[0].mxu0
    %v666 = vadd.f32 0.0, %v665
    %v667 = vpop.f32.mrb[0].mxu0
    %668 = vmatprep.mubr.bf16.mxu0 0
    %669 = vmatmul.mubr.bf16.gmra.mrb[0].mxu0 %v522
    %v670 = vpop.f32.mrb[0].mxu0
    %v671 = vadd.f32 0.0, %v670
    %v672 = vpop.f32.mrb[0].mxu0
    %v673 = vpop.f32.mrb[0].mxu0
    %v674 = vadd.f32 0.0, %v673
    %v675 = vpop.f32.mrb[0].mxu0
    %676 = vmatprep.mubr.bf16.mxu0 0
    %677 = vmatmul.mubr.bf16.gmra.mrb[0].mxu0 %v523
    %v678 = vpop.f32.mrb[0].mxu0
    %v679 = vadd.f32 0.0, %v678
    %v680 = vpop.f32.mrb[0].mxu0
    %v681 = vpop.f32.mrb[0].mxu0
    %v682 = vadd.f32 0.0, %v681
    %v683 = vpop.f32.mrb[0].mxu0
    %684 = vdwg.mxu0
    %v685 = vpack.c.bf16 %v626, %v623
    %v686 = vpack.c.bf16 %v634, %v631
    %v687 = vpack.c.bf16 %v642, %v639
    %v688 = vpack.c.bf16 %v650, %v647
    %v689 = vpack.c.bf16 %v658, %v655
    %v690 = vpack.c.bf16 %v666, %v663
    %v691 = vpack.c.bf16 %v674, %v671
    %v692 = vpack.c.bf16 %v682, %v679
    %v693 = vld [vmem:[%s5] sm:$0x1]
    %v695 = vlaneseq
    %v696 = vshrl.u32 %v695, 7
    %v697 = vsub.s32 0, %v696
    %v698 = vrot.slane %v693, %v697
    %700 = vmatprep.subr.bf16.mxu0 0
    %701 = vmatpush1.bf16.msra.mxu0 %v685
    %702 = vmatprep.subr.bf16.mxu0 0
    %703 = vmatpush1.bf16.msra.mxu0 %v686
    %704 = vmatprep.subr.bf16.mxu0 0
    %705 = vmatpush1.bf16.msra.mxu0 %v687
    %706 = vmatprep.subr.bf16.mxu0 0
    %707 = vmatpush1.bf16.msra.mxu0 %v688
    %708 = vmatprep.subr.bf16.mxu0 0
    %709 = vmatpush1.bf16.msra.mxu0 %v689
    %710 = vmatprep.subr.bf16.mxu0 0
    %711 = vmatpush1.bf16.msra.mxu0 %v690
    %712 = vmatprep.subr.bf16.mxu0 0
    %713 = vmatpush1.bf16.msra.mxu0 %v691
    %714 = vmatprep.subr.bf16.mxu0 0
    %715 = vmatpush1.bf16.msra.mxu0 %v692
    %716 = vmatprep.subr.bf16.mxu0 0
    %717 = vmatpush1.bf16.msra.mxu0 0
    %718 = vmatprep.subr.bf16.mxu0 0
    %719 = vmatpush1.bf16.msra.mxu0 0
    %720 = vmatprep.subr.bf16.mxu0 0
    %721 = vmatpush1.bf16.msra.mxu0 0
    %722 = vmatprep.subr.bf16.mxu0 0
    %723 = vmatpush1.bf16.msra.mxu0 0
    %724 = vmatprep.subr.bf16.mxu0 0
    %725 = vmatpush1.bf16.msra.mxu0 0
    %726 = vmatprep.subr.bf16.mxu0 0
    %727 = vmatpush1.bf16.msra.mxu0 0
    %728 = vmatprep.subr.bf16.mxu0 0
    %729 = vmatpush1.bf16.msra.mxu0 0
    %730 = vmatprep.subr.bf16.mxu0 0
    %731 = vmatpush1.bf16.msra.mxu0 0
    %732 = vmatprep.mubr.bf16.mxu0 0
    %733 = vmatmul.mubr.bf16.gmra.mrb[0].mxu0 %v387
    %v734 = vpop.f32.mrb[0].mxu0
    %v735 = vadd.f32 %v698, %v734
    %v736 = vpop.f32.mrb[0].mxu0
    %v737 = vpop.f32.mrb[0].mxu0
    %v738 = vadd.f32 %v698, %v737
    %v739 = vpop.f32.mrb[0].mxu0
    %740 = vmatprep.mubr.bf16.mxu0 0
    %741 = vmatmul.mubr.bf16.gmra.mrb[0].mxu0 %v388
    %v742 = vpop.f32.mrb[0].mxu0
    %v743 = vadd.f32 %v698, %v742
    %v744 = vpop.f32.mrb[0].mxu0
    %v745 = vpop.f32.mrb[0].mxu0
    %v746 = vadd.f32 %v698, %v745
    %v747 = vpop.f32.mrb[0].mxu0
    %748 = vmatprep.mubr.bf16.mxu0 0
    %749 = vmatmul.mubr.bf16.gmra.mrb[0].mxu0 %v389
    %v750 = vpop.f32.mrb[0].mxu0
    %v751 = vadd.f32 %v698, %v750
    %v752 = vpop.f32.mrb[0].mxu0
    %v753 = vpop.f32.mrb[0].mxu0
    %v754 = vadd.f32 %v698, %v753
    %v755 = vpop.f32.mrb[0].mxu0
    %756 = vmatprep.mubr.bf16.mxu0 0
    %757 = vmatmul.mubr.bf16.gmra.mrb[0].mxu0 %v390
    %v758 = vpop.f32.mrb[0].mxu0
    %v759 = vadd.f32 %v698, %v758
    %v760 = vpop.f32.mrb[0].mxu0
    %v761 = vpop.f32.mrb[0].mxu0
    %v762 = vadd.f32 %v698, %v761
    %v763 = vpop.f32.mrb[0].mxu0
    %764 = vmatprep.mubr.bf16.mxu0 0
    %765 = vmatmul.mubr.bf16.gmra.mrb[0].mxu0 %v391
    %v766 = vpop.f32.mrb[0].mxu0
    %v767 = vadd.f32 %v698, %v766
    %v768 = vpop.f32.mrb[0].mxu0
    %v769 = vpop.f32.mrb[0].mxu0
    %v770 = vadd.f32 %v698, %v769
    %v771 = vpop.f32.mrb[0].mxu0
    %772 = vmatprep.mubr.bf16.mxu0 0
    %773 = vmatmul.mubr.bf16.gmra.mrb[0].mxu0 %v392
    %v774 = vpop.f32.mrb[0].mxu0
    %v775 = vadd.f32 %v698, %v774
    %v776 = vpop.f32.mrb[0].mxu0
    %v777 = vpop.f32.mrb[0].mxu0
    %v778 = vadd.f32 %v698, %v777
    %v779 = vpop.f32.mrb[0].mxu0
    %780 = vmatprep.mubr.bf16.mxu0 0
    %781 = vmatmul.mubr.bf16.gmra.mrb[0].mxu0 %v393
    %v782 = vpop.f32.mrb[0].mxu0
    %v783 = vadd.f32 %v698, %v782
    %v784 = vpop.f32.mrb[0].mxu0
    %v785 = vpop.f32.mrb[0].mxu0
    %v786 = vadd.f32 %v698, %v785
    %v787 = vpop.f32.mrb[0].mxu0
    %788 = vmatprep.mubr.bf16.mxu0 0
    %789 = vmatmul.mubr.bf16.gmra.mrb[0].mxu0 %v394
    %v790 = vpop.f32.mrb[0].mxu0
    %v791 = vadd.f32 %v698, %v790
    %v792 = vpop.f32.mrb[0].mxu0
    %v793 = vpop.f32.mrb[0].mxu0
    %v794 = vadd.f32 %v698, %v793
    %v795 = vpop.f32.mrb[0].mxu0
    %796 = vdwg.mxu0
    %v797 = vmax.f32 %v735, 0.0
    %v798 = vmax.f32 %v738, 0.0
    %v799 = vmax.f32 %v743, 0.0
    %v800 = vmax.f32 %v746, 0.0
    %v801 = vmax.f32 %v751, 0.0
    %v802 = vmax.f32 %v754, 0.0
    %v803 = vmax.f32 %v759, 0.0
    %v804 = vmax.f32 %v762, 0.0
    %v805 = vmax.f32 %v767, 0.0
    %v806 = vmax.f32 %v770, 0.0
    %v807 = vmax.f32 %v775, 0.0
    %v808 = vmax.f32 %v778, 0.0
    %v809 = vmax.f32 %v783, 0.0
    %v810 = vmax.f32 %v786, 0.0
    %v811 = vmax.f32 %v791, 0.0
    %v812 = vmax.f32 %v794, 0.0
    %v813 = vpack.c.bf16 %v798, %v797
    %v814 = vpack.c.bf16 %v800, %v799
    %v815 = vpack.c.bf16 %v802, %v801
    %v816 = vpack.c.bf16 %v804, %v803
    %v817 = vpack.c.bf16 %v806, %v805
    %v818 = vpack.c.bf16 %v808, %v807
    %v819 = vpack.c.bf16 %v810, %v809
    %v820 = vpack.c.bf16 %v812, %v811
    %v821 = vld [vmem:[#allocation10] sm:$0xf]
    %v822 = vld [vmem:[#allocation10 + $0x4] sm:$0xf]
    %v823 = vld [vmem:[#allocation10 + $0x8] sm:$0xf]
    %v824 = vld [vmem:[#allocation10 + $0xc] sm:$0xf]
    %v825 = vld [vmem:[#allocation10 + $0x10] sm:$0xf]
    %v826 = vld [vmem:[#allocation10 + $0x14] sm:$0xf]
    %v827 = vld [vmem:[#allocation10 + $0x18] sm:$0xf]
    %v828 = vld [vmem:[#allocation10 + $0x1c] sm:$0xf]
    %v829 = vld [vmem:[#allocation10 + $0x20] sm:$0xf]
    %v830 = vld [vmem:[#allocation10 + $0x24] sm:$0xf]
    %v831 = vld [vmem:[#allocation10 + $0x28] sm:$0xf]
    %v832 = vld [vmem:[#allocation10 + $0x2c] sm:$0xf]
    %v833 = vld [vmem:[#allocation10 + $0x30] sm:$0xf]
    %v834 = vld [vmem:[#allocation10 + $0x34] sm:$0xf]
    %v835 = vld [vmem:[#allocation10 + $0x38] sm:$0xf]
    %v836 = vld [vmem:[#allocation10 + $0x3c] sm:$0xf]
    %v837 = vld [vmem:[%s7] sm:$0x1]
    %v839 = vlaneseq
    %v840 = vshrl.u32 %v839, 7
    %v841 = vsub.s32 0, %v840
    %v842 = vrot.slane %v837, %v841
    %v860 = vunpack.c.l.b16 %v821
    %v861 = vunpack.c.l.b16 %v822
    %v862 = vunpack.c.l.b16 %v823
    %v863 = vunpack.c.l.b16 %v824
    %v864 = vunpack.c.l.b16 %v825
    %v865 = vunpack.c.l.b16 %v826
    %v866 = vunpack.c.l.b16 %v827
    %v867 = vunpack.c.l.b16 %v828
    %v868 = vunpack.c.l.b16 %v829
    %v869 = vunpack.c.l.b16 %v830
    %v870 = vunpack.c.l.b16 %v831
    %v871 = vunpack.c.l.b16 %v832
    %v872 = vunpack.c.l.b16 %v833
    %v873 = vunpack.c.l.b16 %v834
    %v874 = vunpack.c.l.b16 %v835
    %v875 = vunpack.c.l.b16 %v836
    %v876 = vpack.c.b16 %v861, %v860
    %v877 = vpack.c.b16 %v863, %v862
    %v878 = vpack.c.b16 %v865, %v864
    %v879 = vpack.c.b16 %v867, %v866
    %v880 = vpack.c.b16 %v869, %v868
    %v881 = vpack.c.b16 %v871, %v870
    %v882 = vpack.c.b16 %v873, %v872
    %v883 = vpack.c.b16 %v875, %v874
    %892 = vmatprep.subr.bf16.mxu0 0
    %893 = vmatpush1.bf16.msra.mxu0 %v876
    %894 = vmatprep.subr.bf16.mxu0 0
    %895 = vmatpush1.bf16.msra.mxu0 %v877
    %896 = vmatprep.subr.bf16.mxu0 0
    %897 = vmatpush1.bf16.msra.mxu0 %v878
    %898 = vmatprep.subr.bf16.mxu0 0
    %899 = vmatpush1.bf16.msra.mxu0 %v879
    %900 = vmatprep.subr.bf16.mxu0 0
    %901 = vmatpush1.bf16.msra.mxu0 %v880
    %902 = vmatprep.subr.bf16.mxu0 0
    %903 = vmatpush1.bf16.msra.mxu0 %v881
    %904 = vmatprep.subr.bf16.mxu0 0
    %905 = vmatpush1.bf16.msra.mxu0 %v882
    %906 = vmatprep.subr.bf16.mxu0 0
    %907 = vmatpush1.bf16.msra.mxu0 %v883
    %908 = vmatprep.subr.bf16.mxu0 0
    %909 = vmatpush1.bf16.msra.mxu0 0
    %910 = vmatprep.subr.bf16.mxu0 0
    %911 = vmatpush1.bf16.msra.mxu0 0
    %912 = vmatprep.subr.bf16.mxu0 0
    %913 = vmatpush1.bf16.msra.mxu0 0
    %914 = vmatprep.subr.bf16.mxu0 0
    %915 = vmatpush1.bf16.msra.mxu0 0
    %916 = vmatprep.subr.bf16.mxu0 0
    %917 = vmatpush1.bf16.msra.mxu0 0
    %918 = vmatprep.subr.bf16.mxu0 0
    %919 = vmatpush1.bf16.msra.mxu0 0
    %920 = vmatprep.subr.bf16.mxu0 0
    %921 = vmatpush1.bf16.msra.mxu0 0
    %922 = vmatprep.subr.bf16.mxu0 0
    %923 = vmatpush1.bf16.msra.mxu0 0
    %924 = vmatprep.mubr.bf16.mxu0 0
    %925 = vmatmul.mubr.bf16.gmra.mrb[0].mxu0 %v813
    %v926 = vpop.f32.mrb[0].mxu0
    %v927 = vadd.f32 %v842, %v926
    %v928 = vpop.f32.mrb[0].mxu0
    %v929 = vpop.f32.mrb[0].mxu0
    %v930 = vadd.f32 %v842, %v929
    %v931 = vpop.f32.mrb[0].mxu0
    %932 = vmatprep.mubr.bf16.mxu0 0
    %933 = vmatmul.mubr.bf16.gmra.mrb[0].mxu0 %v814
    %v934 = vpop.f32.mrb[0].mxu0
    %v935 = vadd.f32 %v842, %v934
    %v936 = vpop.f32.mrb[0].mxu0
    %v937 = vpop.f32.mrb[0].mxu0
    %v938 = vadd.f32 %v842, %v937
    %v939 = vpop.f32.mrb[0].mxu0
    %940 = vmatprep.mubr.bf16.mxu0 0
    %941 = vmatmul.mubr.bf16.gmra.mrb[0].mxu0 %v815
    %v942 = vpop.f32.mrb[0].mxu0
    %v943 = vadd.f32 %v842, %v942
    %v944 = vpop.f32.mrb[0].mxu0
    %v945 = vpop.f32.mrb[0].mxu0
    %v946 = vadd.f32 %v842, %v945
    %v947 = vpop.f32.mrb[0].mxu0
    %948 = vmatprep.mubr.bf16.mxu0 0
    %949 = vmatmul.mubr.bf16.gmra.mrb[0].mxu0 %v816
    %v950 = vpop.f32.mrb[0].mxu0
    %v951 = vadd.f32 %v842, %v950
    %v952 = vpop.f32.mrb[0].mxu0
    %v953 = vpop.f32.mrb[0].mxu0
    %v954 = vadd.f32 %v842, %v953
    %v955 = vpop.f32.mrb[0].mxu0
    %956 = vmatprep.mubr.bf16.mxu0 0
    %957 = vmatmul.mubr.bf16.gmra.mrb[0].mxu0 %v817
    %v958 = vpop.f32.mrb[0].mxu0
    %v959 = vadd.f32 %v842, %v958
    %v960 = vpop.f32.mrb[0].mxu0
    %v961 = vpop.f32.mrb[0].mxu0
    %v962 = vadd.f32 %v842, %v961
    %v963 = vpop.f32.mrb[0].mxu0
    %964 = vmatprep.mubr.bf16.mxu0 0
    %965 = vmatmul.mubr.bf16.gmra.mrb[0].mxu0 %v818
    %v966 = vpop.f32.mrb[0].mxu0
    %v967 = vadd.f32 %v842, %v966
    %v968 = vpop.f32.mrb[0].mxu0
    %v969 = vpop.f32.mrb[0].mxu0
    %v970 = vadd.f32 %v842, %v969
    %v971 = vpop.f32.mrb[0].mxu0
    %972 = vmatprep.mubr.bf16.mxu0 0
    %973 = vmatmul.mubr.bf16.gmra.mrb[0].mxu0 %v819
    %v974 = vpop.f32.mrb[0].mxu0
    %v975 = vadd.f32 %v842, %v974
    %v976 = vpop.f32.mrb[0].mxu0
    %v977 = vpop.f32.mrb[0].mxu0
    %v978 = vadd.f32 %v842, %v977
    %v979 = vpop.f32.mrb[0].mxu0
    %980 = vmatprep.mubr.bf16.mxu0 0
    %981 = vmatmul.mubr.bf16.gmra.mrb[0].mxu0 %v820
    %v982 = vpop.f32.mrb[0].mxu0
    %v983 = vadd.f32 %v842, %v982
    %v984 = vpop.f32.mrb[0].mxu0
    %v985 = vpop.f32.mrb[0].mxu0
    %v986 = vadd.f32 %v842, %v985
    %v987 = vpop.f32.mrb[0].mxu0
    %988 = vdwg.mxu0
    %989 = vmax.xlane.f32.xlu0 %v927
    %v990 = vpop.xlane.xlu0 %989
    %991 = vmax.xlane.f32.xlu0 %v930
    %v992 = vpop.xlane.xlu0 %991
    %993 = vmax.xlane.f32.xlu0 %v935
    %v994 = vpop.xlane.xlu0 %993
    %995 = vmax.xlane.f32.xlu0 %v938
    %v996 = vpop.xlane.xlu0 %995
    %997 = vmax.xlane.f32.xlu0 %v943
    %v998 = vpop.xlane.xlu0 %997
    %999 = vmax.xlane.f32.xlu0 %v946
    %v1000 = vpop.xlane.xlu0 %999
    %1001 = vmax.xlane.f32.xlu0 %v951
    %v1002 = vpop.xlane.xlu0 %1001
    %1003 = vmax.xlane.f32.xlu0 %v954
    %v1004 = vpop.xlane.xlu0 %1003
    %1005 = vmax.xlane.f32.xlu0 %v959
    %v1006 = vpop.xlane.xlu0 %1005
    %1007 = vmax.xlane.f32.xlu0 %v962
    %v1008 = vpop.xlane.xlu0 %1007
    %1009 = vmax.xlane.f32.xlu0 %v967
    %v1010 = vpop.xlane.xlu0 %1009
    %1011 = vmax.xlane.f32.xlu0 %v970
    %v1012 = vpop.xlane.xlu0 %1011
    %1013 = vmax.xlane.f32.xlu0 %v975
    %v1014 = vpop.xlane.xlu0 %1013
    %1015 = vmax.xlane.f32.xlu0 %v978
    %v1016 = vpop.xlane.xlu0 %1015
    %1017 = vmax.xlane.f32.xlu0 %v983
    %v1018 = vpop.xlane.xlu0 %1017
    %1019 = vmax.xlane.f32.xlu0 %v986
    %v1020 = vpop.xlane.xlu0 %1019
    %v1021 = vsub.f32 %v927, %v990
    %v1022 = vsub.f32 %v930, %v992
    %v1023 = vsub.f32 %v935, %v994
    %v1024 = vsub.f32 %v938, %v996
    %v1025 = vsub.f32 %v943, %v998
    %v1026 = vsub.f32 %v946, %v1000
    %v1027 = vsub.f32 %v951, %v1002
    %v1028 = vsub.f32 %v954, %v1004
    %v1029 = vsub.f32 %v959, %v1006
    %v1030 = vsub.f32 %v962, %v1008
    %v1031 = vsub.f32 %v967, %v1010
    %v1032 = vsub.f32 %v970, %v1012
    %v1033 = vsub.f32 %v975, %v1014
    %v1034 = vsub.f32 %v978, %v1016
    %v1035 = vsub.f32 %v983, %v1018
    %v1036 = vsub.f32 %v986, %v1020
    %v1037 = vmul.f32 %v1021, 1.442695
    %v1038 = vpow.pop %v1037
    %v1039 = vmul.f32 %v1022, 1.442695
    %v1040 = vpow.pop %v1039
    %v1041 = vmul.f32 %v1023, 1.442695
    %v1042 = vpow.pop %v1041
    %v1043 = vmul.f32 %v1024, 1.442695
    %v1044 = vpow.pop %v1043
    %v1045 = vmul.f32 %v1025, 1.442695
    %v1046 = vpow.pop %v1045
    %v1047 = vmul.f32 %v1026, 1.442695
    %v1048 = vpow.pop %v1047
    %v1049 = vmul.f32 %v1027, 1.442695
    %v1050 = vpow.pop %v1049
    %v1051 = vmul.f32 %v1028, 1.442695
    %v1052 = vpow.pop %v1051
    %v1053 = vmul.f32 %v1029, 1.442695
    %v1054 = vpow.pop %v1053
    %v1055 = vmul.f32 %v1030, 1.442695
    %v1056 = vpow.pop %v1055
    %v1057 = vmul.f32 %v1031, 1.442695
    %v1058 = vpow.pop %v1057
    %v1059 = vmul.f32 %v1032, 1.442695
    %v1060 = vpow.pop %v1059
    %v1061 = vmul.f32 %v1033, 1.442695
    %v1062 = vpow.pop %v1061
    %v1063 = vmul.f32 %v1034, 1.442695
    %v1064 = vpow.pop %v1063
    %v1065 = vmul.f32 %v1035, 1.442695
    %v1066 = vpow.pop %v1065
    %v1067 = vmul.f32 %v1036, 1.442695
    %v1068 = vpow.pop %v1067
    %1069 = vadd.xlane.f32.xlu0 %v1038
    %v1070 = vpop.xlane.xlu0 %1069
    %1071 = vadd.xlane.f32.xlu0 %v1040
    %v1072 = vpop.xlane.xlu0 %1071
    %1073 = vadd.xlane.f32.xlu0 %v1042
    %v1074 = vpop.xlane.xlu0 %1073
    %1075 = vadd.xlane.f32.xlu0 %v1044
    %v1076 = vpop.xlane.xlu0 %1075
    %1077 = vadd.xlane.f32.xlu0 %v1046
    %v1078 = vpop.xlane.xlu0 %1077
    %1079 = vadd.xlane.f32.xlu0 %v1048
    %v1080 = vpop.xlane.xlu0 %1079
    %1081 = vadd.xlane.f32.xlu0 %v1050
    %v1082 = vpop.xlane.xlu0 %1081
    %1083 = vadd.xlane.f32.xlu0 %v1052
    %v1084 = vpop.xlane.xlu0 %1083
    %1085 = vadd.xlane.f32.xlu0 %v1054
    %v1086 = vpop.xlane.xlu0 %1085
    %1087 = vadd.xlane.f32.xlu0 %v1056
    %v1088 = vpop.xlane.xlu0 %1087
    %1089 = vadd.xlane.f32.xlu0 %v1058
    %v1090 = vpop.xlane.xlu0 %1089
    %1091 = vadd.xlane.f32.xlu0 %v1060
    %v1092 = vpop.xlane.xlu0 %1091
    %1093 = vadd.xlane.f32.xlu0 %v1062
    %v1094 = vpop.xlane.xlu0 %1093
    %1095 = vadd.xlane.f32.xlu0 %v1064
    %v1096 = vpop.xlane.xlu0 %1095
    %1097 = vadd.xlane.f32.xlu0 %v1066
    %v1098 = vpop.xlane.xlu0 %1097
    %1099 = vadd.xlane.f32.xlu0 %v1068
    %v1100 = vpop.xlane.xlu0 %1099
    %v1101 = vrcp.pop %v1070
    %v1102 = vrcp.pop %v1072
    %v1103 = vrcp.pop %v1074
    %v1104 = vrcp.pop %v1076
    %v1105 = vrcp.pop %v1078
    %v1106 = vrcp.pop %v1080
    %v1107 = vrcp.pop %v1082
    %v1108 = vrcp.pop %v1084
    %v1109 = vrcp.pop %v1086
    %v1110 = vrcp.pop %v1088
    %v1111 = vrcp.pop %v1090
    %v1112 = vrcp.pop %v1092
    %v1113 = vrcp.pop %v1094
    %v1114 = vrcp.pop %v1096
    %v1115 = vrcp.pop %v1098
    %v1116 = vrcp.pop %v1100
    %v1117 = vmul.f32 %v1038, %v1101
    %v1118 = vmul.f32 %v1040, %v1102
    %v1119 = vmul.f32 %v1042, %v1103
    %v1120 = vmul.f32 %v1044, %v1104
    %v1121 = vmul.f32 %v1046, %v1105
    %v1122 = vmul.f32 %v1048, %v1106
    %v1123 = vmul.f32 %v1050, %v1107
    %v1124 = vmul.f32 %v1052, %v1108
    %v1125 = vmul.f32 %v1054, %v1109
    %v1126 = vmul.f32 %v1056, %v1110
    %v1127 = vmul.f32 %v1058, %v1111
    %v1128 = vmul.f32 %v1060, %v1112
    %v1129 = vmul.f32 %v1062, %v1113
    %v1130 = vmul.f32 %v1064, %v1114
    %v1131 = vmul.f32 %v1066, %v1115
    %v1132 = vmul.f32 %v1068, %v1116
    %1133 = vst [vmem:[#allocation11] sm:$0xff] %v1117
    %1134 = vst [vmem:[#allocation11 + $0x8] sm:$0xff] %v1118
    %1135 = vst [vmem:[#allocation11 + $0x10] sm:$0xff] %v1119
    %1136 = vst [vmem:[#allocation11 + $0x18] sm:$0xff] %v1120
    %1137 = vst [vmem:[#allocation11 + $0x20] sm:$0xff] %v1121
    %1138 = vst [vmem:[#allocation11 + $0x28] sm:$0xff] %v1122
    %1139 = vst [vmem:[#allocation11 + $0x30] sm:$0xff] %v1123
    %1140 = vst [vmem:[#allocation11 + $0x38] sm:$0xff] %v1124
    %1141 = vst [vmem:[#allocation11 + $0x40] sm:$0xff] %v1125
    %1142 = vst [vmem:[#allocation11 + $0x48] sm:$0xff] %v1126
    %1143 = vst [vmem:[#allocation11 + $0x50] sm:$0xff] %v1127
    %1144 = vst [vmem:[#allocation11 + $0x58] sm:$0xff] %v1128
    %1145 = vst [vmem:[#allocation11 + $0x60] sm:$0xff] %v1129
    %1146 = vst [vmem:[#allocation11 + $0x68] sm:$0xff] %v1130
    %1147 = vst [vmem:[#allocation11 + $0x70] sm:$0xff] %v1131
    %1148 = vst [vmem:[#allocation11 + $0x78] sm:$0xff] %v1132
    // Predicated region
    $region54: #{tpu_custom_call.1} parent=1 // pred_check
      _
    $region55: #{tpu_custom_call.1} parent=1 // pred_check_branch
      %1150 = sbr.rel (0) target = $region57
    $region56: #{tpu_custom_call.1} parent=1 // pred_region
      %s1152 = ssub.s32 2048, 2048
      %1153 = vsyncadd [#allocation4], %s1152
      %s1154 = sshll.u32 [#allocation11], 4
      %s1155 = int_to_ptr.vmem [resolvable:$true] %s1154
      %1160 = dma.vmem_to_hbm [thread:$0]  %s1155, 2048, %s8, [#allocation4], 128, 128, 8
    $region57: #{tpu_custom_call.1} parent=1 // pred_fallthru
      _
    // Predicated region
    $region58: #{tpu_custom_call.1} parent=1 // pred_check
      _
    $region59: #{tpu_custom_call.1} parent=1 // pred_check_branch
      %1162 = sbr.rel (0) target = $region61
    $region60: #{tpu_custom_call.1} parent=1 // pred_region
      %1163 = dma.done [#allocation4], 2048
    $region61: #{tpu_custom_call.1} parent=1 // pred_fallthru
      _
    %1164 = vsyncpa [#allocation3], 1
    %1165 = vsyncpa [#allocation6], 1
    %1166 = vsyncpa [#allocation9], 1
    %1167 = vsyncpa [#allocation4], 1

</llo_original>
